<compile_context>
chip_gen: v6e
topology: v6e:2x2x1
jax: 0.10.0
libtpu: 0.0.40
codegen_flags: <defaults>
</compile_context>

<pallas_src>
import jax
import jax.numpy as jnp
from jax.experimental import pallas as pl
from jax.experimental.pallas import tpu as pltpu

_LANES = 128
_SUBLANES = 8


def _dice_sums_kernel(score_ref, target_ref, st_ref, ss_ref, tt_ref):
    """grid = (split, class, spatial_tile).

    score_ref / target_ref : (B, row_tile, 128) blocks (class dim squeezed).
    st/ss/tt_ref           : (8, 128) per-(split, class) output blocks that stay
                             VMEM-resident across the spatial axis (accumulators).
    """
    s_idx = pl.program_id(2)

    @pl.when(s_idx == 0)
    def _():
        st_ref[...] = jnp.zeros_like(st_ref)
        ss_ref[...] = jnp.zeros_like(ss_ref)
        tt_ref[...] = jnp.zeros_like(tt_ref)

    # Upcast in-register; reshape is tile-aligned (row_tile % 8 == 0) => free.
    s = score_ref[...].astype(jnp.float32).reshape(-1, _SUBLANES, _LANES)
    t = target_ref[...].astype(jnp.float32).reshape(-1, _SUBLANES, _LANES)

    # Pure-VPU partial sums over the leading (vreg) axis; one vreg-sized
    # read-modify-write per accumulator per tile.  The full cross-lane collapse
    # happens outside the kernel on the tiny (n_split, C, 8, 128) outputs.
    st_ref[...] += jnp.sum(s * t, axis=0)
    ss_ref[...] += jnp.sum(s * s, axis=0)
    tt_ref[...] += jnp.sum(t * t, axis=0)


def _round_up(x, m):
    return ((x + m - 1) // m) * m


def dice_loss(inputs, target, weight=None, softmax=False,
              _target_block_bytes=2 * 1024 * 1024):
    """Pallas implementation of DiceLoss.forward.

    inputs, target: (B, C, H, W) arrays of identical shape (target already
    one-hot / float, matching the PyTorch assert).  Returns a scalar f32 loss.
    """
    assert inputs.shape == target.shape, (
        f"predict {inputs.shape} & target {target.shape} shape do not match")
    B, C, H, W = inputs.shape

    if softmax:
        # TODO(synk): fuse softmax into the kernel (block over spatial with the
        # full class axis resident) to remove the extra HBM round trip.
        inputs = jax.nn.softmax(inputs, axis=1)
    if weight is None:
        weight = [1.0] * C
    weight = jnp.asarray(weight, dtype=jnp.float32)

    HW = H * W
    itemsize = max(jnp.dtype(inputs.dtype).itemsize,
                   jnp.dtype(target.dtype).itemsize)

    # ---- spatial tiling (itemsize-aware, lane-dense, (8,128)-aligned) ------
    rows_raw = _round_up(HW, _LANES) // _LANES        # 128-lane rows needed
    row_bytes = B * _LANES * itemsize                 # HBM bytes per row / input
    row_tile = max(_SUBLANES,
                   (_target_block_bytes // max(row_bytes, 1))
                   // _SUBLANES * _SUBLANES)
    row_tile = min(row_tile, _round_up(rows_raw, _SUBLANES))

    n_spatial = _round_up(rows_raw, row_tile) // row_tile
    # v7x has 2 TensorCores: with an odd/small class count, split the spatial
    # range across a second parallel axis so both cores get balanced work.
    n_split = 2 if (C % 2 == 1 and n_spatial >= 2) else 1
    rows = _round_up(rows_raw, row_tile * n_split)
    n_spatial = rows // row_tile
    n_sp_per_split = n_spatial // n_split
    HW_pad = rows * _LANES

    def _prep(x):
        x = x.reshape(B, C, HW)                       # free (H,W contiguous)
        if HW_pad != HW:
            # Zero padding is exact: padded elements add 0 to every sum.
            x = jnp.pad(x, ((0, 0), (0, 0), (0, HW_pad - HW)))
        return x.reshape(B, C, rows, _LANES)          # lane-dense, no transpose

    score = _prep(inputs)
    tgt = _prep(target)

    in_block = (B, None, row_tile, _LANES)            # class dim squeezed
    in_map = lambda p, c, s: (0, c, p * n_sp_per_split + s, 0)
    out_spec = pl.BlockSpec((None, None, _SUBLANES, _LANES),
                            lambda p, c, s: (p, c, 0, 0))
    out_sds = jax.ShapeDtypeStruct((n_split, C, _SUBLANES, _LANES), jnp.float32)

    st, ss, tt = pl.pallas_call(
        _dice_sums_kernel,
        out_shape=(out_sds, out_sds, out_sds),
        grid_spec=pltpu.PrefetchScalarGridSpec(
            num_scalar_prefetch=0,
            grid=(n_split, C, n_sp_per_split),
            in_specs=[
                pl.BlockSpec(in_block, in_map),
                pl.BlockSpec(in_block, in_map),
            ],
            out_specs=[out_spec, out_spec, out_spec],
        ),
        compiler_params=pltpu.CompilerParams(
            dimension_semantics=("parallel", "parallel", "arbitrary"),
            vmem_limit_bytes=32 * 1024 * 1024,        # safe on v5e/v6e/v7x
        ),
    )(score, tgt)

    # Tiny O(n_split * C * 1024) finalization outside the kernel.
    intersect = jnp.sum(st, axis=(0, 2, 3))           # (C,)
    z_sum = jnp.sum(ss, axis=(0, 2, 3))
    y_sum = jnp.sum(tt, axis=(0, 2, 3))
    smooth = jnp.float32(1e-5)
    dice = jnp.float32(1.0) - (jnp.float32(2.0) * intersect + smooth) / (
        z_sum + y_sum + smooth)
    return jnp.sum(dice * weight) / jnp.float32(C)


def _dice_loss_ref(inputs, target, weight=None, softmax=False):
    """Plain-JAX reference mirroring the PyTorch module."""
    if softmax:
        inputs = jax.nn.softmax(inputs, axis=1)
    C = inputs.shape[1]
    if weight is None:
        weight = [1.0] * C
    smooth = 1e-5
    loss = 0.0
    for i in range(C):
        s = inputs[:, i].astype(jnp.float32)
        t = target[:, i].astype(jnp.float32)
        intersect = jnp.sum(s * t)
        y_sum = jnp.sum(t * t)
        z_sum = jnp.sum(s * s)
        dice = 1.0 - (2.0 * intersect + smooth) / (z_sum + y_sum + smooth)
        loss = loss + dice * weight[i]
    return loss / C


if __name__ == "__main__":
    key = jax.random.PRNGKey(0)
    k1, k2, k3, k4, k5, k6 = jax.random.split(key, 6)

    # --- Test 1: canonical small shape (B=2, C=4, 16x16), f32 probabilities.
    B, C, H, W = 2, 4, 16, 16
    logits = jax.random.normal(k1, (B, C, H, W), dtype=jnp.float32)
    probs = jax.nn.softmax(logits, axis=1)
    labels = jax.random.randint(k2, (B, H, W), 0, C)
    target = jax.nn.one_hot(labels, C, axis=1, dtype=jnp.float32)

    out = jax.block_until_ready(dice_loss(probs, target))
    ref = _dice_loss_ref(probs, target)
    assert jnp.allclose(out, ref, atol=1e-5, rtol=1e-5), (out, ref)

    # --- Test 2: softmax=True path + explicit class weights.
    w = [0.5, 1.0, 1.5, 2.0]
    out2 = jax.block_until_ready(dice_loss(logits, target, weight=w, softmax=True))
    ref2 = _dice_loss_ref(logits, target, weight=w, softmax=True)
    assert jnp.allclose(out2, ref2, atol=1e-5, rtol=1e-5), (out2, ref2)

    # --- Test 3: H*W not a multiple of 128 (exercises the zero-padding path).
    Bp, Cp, Hp, Wp = 2, 4, 7, 7
    logits_p = jax.random.normal(k3, (Bp, Cp, Hp, Wp), dtype=jnp.float32)
    probs_p = jax.nn.softmax(logits_p, axis=1)
    labels_p = jax.random.randint(k4, (Bp, Hp, Wp), 0, Cp)
    target_p = jax.nn.one_hot(labels_p, Cp, axis=1, dtype=jnp.float32)
    out3 = jax.block_until_ready(dice_loss(probs_p, target_p))
    ref3 = _dice_loss_ref(probs_p, target_p)
    assert jnp.allclose(out3, ref3, atol=1e-5, rtol=1e-5), (out3, ref3)

    # --- Test 4: odd class count + several spatial tiles (exercises the v7x
    # two-core split and the multi-tile accumulation) with bf16 inputs.
    Bs, Cs, Hs, Ws = 2, 3, 64, 64
    logits_s = jax.random.normal(k5, (Bs, Cs, Hs, Ws), dtype=jnp.float32)
    probs_s = jax.nn.softmax(logits_s, axis=1).astype(jnp.bfloat16)
    labels_s = jax.random.randint(k6, (Bs, Hs, Ws), 0, Cs)
    target_s = jax.nn.one_hot(labels_s, Cs, axis=1, dtype=jnp.bfloat16)
    out4 = jax.block_until_ready(
        dice_loss(probs_s, target_s, _target_block_bytes=4 * 1024))
    ref4 = _dice_loss_ref(probs_s, target_s)
    assert jnp.allclose(out4, ref4, atol=1e-4, rtol=1e-4), (out4, ref4)

    print("KERNEL_OK")
</pallas_src>

<mosaic_0001>
module attributes {stable_mosaic.version = 11 : i64} {
  func.func @_dice_sums_kernel(%arg0: i32, %arg1: i32, %arg2: i32, %arg3: memref<2x1x8x128xf32, #tpu.memory_space<vmem>>, %arg4: memref<2x1x8x128xf32, #tpu.memory_space<vmem>>, %arg5: memref<1x1x8x128xf32, #tpu.memory_space<vmem>>, %arg6: memref<1x1x8x128xf32, #tpu.memory_space<vmem>>, %arg7: memref<1x1x8x128xf32, #tpu.memory_space<vmem>>) attributes {dimension_semantics = [#tpu.dimension_semantics<parallel>, #tpu.dimension_semantics<parallel>, #tpu.dimension_semantics<arbitrary>], iteration_bounds = array<i64: 1, 4, 1>, scalar_prefetch = 0 : i64, scratch_operands = 0 : i64, tpu.core_type = #tpu.core_type<tc>, window_params = [{transform_indices = @transform_0, window_bounds = array<i64: 2, 1, 8, 128>}, {transform_indices = @transform_1, window_bounds = array<i64: 2, 1, 8, 128>}, {transform_indices = @transform_2, window_bounds = array<i64: 1, 1, 8, 128>}, {transform_indices = @transform_3, window_bounds = array<i64: 1, 1, 8, 128>}, {transform_indices = @transform_4, window_bounds = array<i64: 1, 1, 8, 128>}]} {
    %c0_i32 = arith.constant 0 : i32
    %0 = arith.cmpi eq, %arg2, %c0_i32 : i32
    %1 = arith.extui %0 : i1 to i32
    %c0_i32_0 = arith.constant 0 : i32
    %2 = arith.cmpi ne, %1, %c0_i32_0 : i32
    scf.if %2 {
      %cst_34 = arith.constant 0.000000e+00 : f32
      %31 = vector.broadcast %cst_34 : f32 to vector<8x128xf32>
      %c0_35 = arith.constant 0 : index
      %c0_36 = arith.constant 0 : index
      %c0_37 = arith.constant 0 : index
      %c0_38 = arith.constant 0 : index
      %32 = vector.load %arg5[%c0_35, %c0_36, %c0_37, %c0_38] : memref<1x1x8x128xf32, #tpu.memory_space<vmem>>, vector<1x1x8x128xf32>
      %33 = vector.shape_cast %32 : vector<1x1x8x128xf32> to vector<8x128xf32>
      %34 = vector.shape_cast %31 : vector<8x128xf32> to vector<1x1x8x128xf32>
      tpu.vector_store %arg5[%c0_35, %c0_36, %c0_37, %c0_38], %34 {strides = array<i32>} : memref<1x1x8x128xf32, #tpu.memory_space<vmem>>, vector<1x1x8x128xf32>,
      %cst_39 = arith.constant 0.000000e+00 : f32
      %35 = vector.broadcast %cst_39 : f32 to vector<8x128xf32>
      %c0_40 = arith.constant 0 : index
      %c0_41 = arith.constant 0 : index
      %c0_42 = arith.constant 0 : index
      %c0_43 = arith.constant 0 : index
      %36 = vector.load %arg6[%c0_40, %c0_41, %c0_42, %c0_43] : memref<1x1x8x128xf32, #tpu.memory_space<vmem>>, vector<1x1x8x128xf32>
      %37 = vector.shape_cast %36 : vector<1x1x8x128xf32> to vector<8x128xf32>
      %38 = vector.shape_cast %35 : vector<8x128xf32> to vector<1x1x8x128xf32>
      tpu.vector_store %arg6[%c0_40, %c0_41, %c0_42, %c0_43], %38 {strides = array<i32>} : memref<1x1x8x128xf32, #tpu.memory_space<vmem>>, vector<1x1x8x128xf32>,
      %cst_44 = arith.constant 0.000000e+00 : f32
      %39 = vector.broadcast %cst_44 : f32 to vector<8x128xf32>
      %c0_45 = arith.constant 0 : index
      %c0_46 = arith.constant 0 : index
      %c0_47 = arith.constant 0 : index
      %c0_48 = arith.constant 0 : index
      %40 = vector.load %arg7[%c0_45, %c0_46, %c0_47, %c0_48] : memref<1x1x8x128xf32, #tpu.memory_space<vmem>>, vector<1x1x8x128xf32>
      %41 = vector.shape_cast %40 : vector<1x1x8x128xf32> to vector<8x128xf32>
      %42 = vector.shape_cast %39 : vector<8x128xf32> to vector<1x1x8x128xf32>
      tpu.vector_store %arg7[%c0_45, %c0_46, %c0_47, %c0_48], %42 {strides = array<i32>} : memref<1x1x8x128xf32, #tpu.memory_space<vmem>>, vector<1x1x8x128xf32>,
    } else {
    }
    %c0 = arith.constant 0 : index
    %c0_1 = arith.constant 0 : index
    %c0_2 = arith.constant 0 : index
    %c0_3 = arith.constant 0 : index
    %3 = vector.load %arg3[%c0, %c0_1, %c0_2, %c0_3] : memref<2x1x8x128xf32, #tpu.memory_space<vmem>>, vector<2x1x8x128xf32>
    %4 = vector.shape_cast %3 : vector<2x1x8x128xf32> to vector<2x8x128xf32>
    %c0_4 = arith.constant 0 : index
    %c0_5 = arith.constant 0 : index
    %c0_6 = arith.constant 0 : index
    %c0_7 = arith.constant 0 : index
    %5 = vector.load %arg4[%c0_4, %c0_5, %c0_6, %c0_7] : memref<2x1x8x128xf32, #tpu.memory_space<vmem>>, vector<2x1x8x128xf32>
    %6 = vector.shape_cast %5 : vector<2x1x8x128xf32> to vector<2x8x128xf32>
    %c0_8 = arith.constant 0 : index
    %c0_9 = arith.constant 0 : index
    %c0_10 = arith.constant 0 : index
    %c0_11 = arith.constant 0 : index
    %7 = vector.load %arg5[%c0_8, %c0_9, %c0_10, %c0_11] : memref<1x1x8x128xf32, #tpu.memory_space<vmem>>, vector<1x1x8x128xf32>
    %8 = vector.shape_cast %7 : vector<1x1x8x128xf32> to vector<8x128xf32>
    %9 = arith.mulf %4, %6 : vector<2x8x128xf32>
    %cst = arith.constant dense<0.000000e+00> : vector<8x128xf32>
    %10 = vector.multi_reduction <add>, %9, %cst [0] : vector<2x8x128xf32> to vector<8x128xf32>
    %11 = arith.addf %8, %10 : vector<8x128xf32>
    %c0_12 = arith.constant 0 : index
    %c0_13 = arith.constant 0 : index
    %c0_14 = arith.constant 0 : index
    %c0_15 = arith.constant 0 : index
    %12 = vector.load %arg5[%c0_12, %c0_13, %c0_14, %c0_15] : memref<1x1x8x128xf32, #tpu.memory_space<vmem>>, vector<1x1x8x128xf32>
    %13 = vector.shape_cast %12 : vector<1x1x8x128xf32> to vector<8x128xf32>
    %14 = vector.shape_cast %11 : vector<8x128xf32> to vector<1x1x8x128xf32>
    tpu.vector_store %arg5[%c0_12, %c0_13, %c0_14, %c0_15], %14 {strides = array<i32>} : memref<1x1x8x128xf32, #tpu.memory_space<vmem>>, vector<1x1x8x128xf32>,
    %c0_16 = arith.constant 0 : index
    %c0_17 = arith.constant 0 : index
    %c0_18 = arith.constant 0 : index
    %c0_19 = arith.constant 0 : index
    %15 = vector.load %arg6[%c0_16, %c0_17, %c0_18, %c0_19] : memref<1x1x8x128xf32, #tpu.memory_space<vmem>>, vector<1x1x8x128xf32>
    %16 = vector.shape_cast %15 : vector<1x1x8x128xf32> to vector<8x128xf32>
    %17 = arith.mulf %4, %4 : vector<2x8x128xf32>
    %cst_20 = arith.constant dense<0.000000e+00> : vector<8x128xf32>
    %18 = vector.multi_reduction <add>, %17, %cst_20 [0] : vector<2x8x128xf32> to vector<8x128xf32>
    %19 = arith.addf %16, %18 : vector<8x128xf32>
    %c0_21 = arith.constant 0 : index
    %c0_22 = arith.constant 0 : index
    %c0_23 = arith.constant 0 : index
    %c0_24 = arith.constant 0 : index
    %20 = vector.load %arg6[%c0_21, %c0_22, %c0_23, %c0_24] : memref<1x1x8x128xf32, #tpu.memory_space<vmem>>, vector<1x1x8x128xf32>
    %21 = vector.shape_cast %20 : vector<1x1x8x128xf32> to vector<8x128xf32>
    %22 = vector.shape_cast %19 : vector<8x128xf32> to vector<1x1x8x128xf32>
    tpu.vector_store %arg6[%c0_21, %c0_22, %c0_23, %c0_24], %22 {strides = array<i32>} : memref<1x1x8x128xf32, #tpu.memory_space<vmem>>, vector<1x1x8x128xf32>,
    %c0_25 = arith.constant 0 : index
    %c0_26 = arith.constant 0 : index
    %c0_27 = arith.constant 0 : index
    %c0_28 = arith.constant 0 : index
    %23 = vector.load %arg7[%c0_25, %c0_26, %c0_27, %c0_28] : memref<1x1x8x128xf32, #tpu.memory_space<vmem>>, vector<1x1x8x128xf32>
    %24 = vector.shape_cast %23 : vector<1x1x8x128xf32> to vector<8x128xf32>
    %25 = arith.mulf %6, %6 : vector<2x8x128xf32>
    %cst_29 = arith.constant dense<0.000000e+00> : vector<8x128xf32>
    %26 = vector.multi_reduction <add>, %25, %cst_29 [0] : vector<2x8x128xf32> to vector<8x128xf32>
    %27 = arith.addf %24, %26 : vector<8x128xf32>
    %c0_30 = arith.constant 0 : index
    %c0_31 = arith.constant 0 : index
    %c0_32 = arith.constant 0 : index
    %c0_33 = arith.constant 0 : index
    %28 = vector.load %arg7[%c0_30, %c0_31, %c0_32, %c0_33] : memref<1x1x8x128xf32, #tpu.memory_space<vmem>>, vector<1x1x8x128xf32>
    %29 = vector.shape_cast %28 : vector<1x1x8x128xf32> to vector<8x128xf32>
    %30 = vector.shape_cast %27 : vector<8x128xf32> to vector<1x1x8x128xf32>
    tpu.vector_store %arg7[%c0_30, %c0_31, %c0_32, %c0_33], %30 {strides = array<i32>} : memref<1x1x8x128xf32, #tpu.memory_space<vmem>>, vector<1x1x8x128xf32>,
    return
  }
  func.func @transform_0(%arg0: i32, %arg1: i32, %arg2: i32) -> (i32, i32, i32, i32) {
    %c1_i32 = arith.constant 1 : i32
    %0 = arith.muli %arg0, %c1_i32 : i32
    %1 = arith.addi %0, %arg2 : i32
    %c0_i32 = arith.constant 0 : i32
    %c0_i32_0 = arith.constant 0 : i32
    %c0_i32_1 = arith.constant 0 : i32
    return %c0_i32, %arg1, %1, %c0_i32_0 : i32, i32, i32, i32
  }
  func.func @transform_1(%arg0: i32, %arg1: i32, %arg2: i32) -> (i32, i32, i32, i32) {
    %c1_i32 = arith.constant 1 : i32
    %0 = arith.muli %arg0, %c1_i32 : i32
    %1 = arith.addi %0, %arg2 : i32
    %c0_i32 = arith.constant 0 : i32
    %c0_i32_0 = arith.constant 0 : i32
    %c0_i32_1 = arith.constant 0 : i32
    return %c0_i32, %arg1, %1, %c0_i32_0 : i32, i32, i32, i32
  }
  func.func @transform_2(%arg0: i32, %arg1: i32, %arg2: i32) -> (i32, i32, i32, i32) {
    %c0_i32 = arith.constant 0 : i32
    %c0_i32_0 = arith.constant 0 : i32
    %c0_i32_1 = arith.constant 0 : i32
    return %arg0, %arg1, %c0_i32, %c0_i32_0 : i32, i32, i32, i32
  }
  func.func @transform_3(%arg0: i32, %arg1: i32, %arg2: i32) -> (i32, i32, i32, i32) {
    %c0_i32 = arith.constant 0 : i32
    %c0_i32_0 = arith.constant 0 : i32
    %c0_i32_1 = arith.constant 0 : i32
    return %arg0, %arg1, %c0_i32, %c0_i32_0 : i32, i32, i32, i32
  }
  func.func @transform_4(%arg0: i32, %arg1: i32, %arg2: i32) -> (i32, i32, i32, i32) {
    %c0_i32 = arith.constant 0 : i32
    %c0_i32_0 = arith.constant 0 : i32
    %c0_i32_1 = arith.constant 0 : i32
    return %arg0, %arg1, %c0_i32, %c0_i32_0 : i32, i32, i32, i32
  }
}

</mosaic_0001>

<llo_original>
// kernel: tpu_custom_call.1
$region0: #{tpu_custom_call.1}
  #allocation0 [shape = 'u32[]', space=smem, size = 0x4, offset = 0x4, fixed_abs, tag = 'smem constant byte address 0x4 - core index']
  #allocation1 [shape = 'u32[144,128]{1,0:T(1,128)}', space=vmem, size = 0x12000, scoped, tag = 'internal scratch']
  %s0 = inlined_call_operand.hbm [shape: f32[2,4,8,128], index: 0, kind: input, shape index: {}]
  %s1 = inlined_call_operand.hbm [shape: f32[2,4,8,128], index: 1, kind: input, shape index: {}]
  %s2 = inlined_call_operand.hbm [shape: f32[1,4,8,128], index: 2, kind: output, shape index: {0}]
  %s3 = inlined_call_operand.hbm [shape: f32[1,4,8,128], index: 3, kind: output, shape index: {1}]
  %s4 = inlined_call_operand.hbm [shape: f32[1,4,8,128], index: 4, kind: output, shape index: {2}]
  %5 = xla_tuple %s2, %s3, %s4
  %s6 = sld [smem:[#allocation0]]
  $region69: #{tpu_custom_call.1} parent=0
    _
  %s8 = ssub.s32 1, %s6
  %s9 = scalar_select 0, %s8, %s6
  $region1: #{tpu_custom_call.1} parent=0
    #allocation2 [shape = 'u8[16384]{0}', space=vmem, size = 0x4000, scoped, tag = 'input window, operand 0']
    #allocation3 [shape = 's32[2]{0}', space=sflag, size = 0x8, scoped, tag = 'scoped memory for tpu_custom_call.1']
    #allocation4 [shape = 's32[2]{0}', space=sflag, size = 0x8, scoped, tag = 'scoped memory for tpu_custom_call.1']
    #allocation5 [shape = 'u8[16384]{0}', space=vmem, size = 0x4000, scoped, tag = 'input window, operand 1']
    #allocation6 [shape = 's32[2]{0}', space=sflag, size = 0x8, scoped, tag = 'scoped memory for tpu_custom_call.1']
    #allocation7 [shape = 'u8[8192]{0}', space=vmem, size = 0x2000, scoped, tag = 'output window, operand 0']
    #allocation8 [shape = 'u8[8192]{0}', space=vmem, size = 0x2000, scoped, tag = 'output window, operand 1']
    #allocation9 [shape = 's32[2]{0}', space=sflag, size = 0x8, scoped, tag = 'scoped memory for tpu_custom_call.1']
    #allocation10 [shape = 'u8[8192]{0}', space=vmem, size = 0x2000, scoped, tag = 'output window, operand 2']
    %10 = vsyncpa [#allocation3], 0
    %s11 = scalar_lea.sflag [#allocation3], 1
    %12 = vsyncpa %s11, 0
    %13 = vsyncpa [#allocation6], 0
    %s14 = scalar_lea.sflag [#allocation6], 1
    %15 = vsyncpa %s14, 0
    %16 = vsyncpa [#allocation4], 0
    %s17 = scalar_lea.sflag [#allocation4], 1
    %18 = vsyncpa %s17, 0
    %19 = vsyncpa [#allocation9], 0
    %s20 = scalar_lea.sflag [#allocation9], 1
    %21 = vsyncpa %s20, 0
    loop: start=0, step=1, limit=6
    $region2: #{tpu_custom_call.1} parent=1 // loop_pre_header
      _
    $region3: #{tpu_custom_call.1} parent=1 // loop_header
      %s23 = sphi 0, %s27
      %p24 = scmp.ge.s32.totalorder %s23, 6
      %s30 = sphi 0, %s49
      %s31 = sphi 0, %s45
      %s32 = sphi 0, %s41
      %s33 = sphi 0, %s30
      %s34 = sphi 0, %s31
      %s35 = sphi 0, %s32
      %s36 = sphi 0, %s33
      %s37 = sphi 0, %s34
      %s38 = sphi 0, %s35
      %s56 = sphi 0, %s58
      %s59 = sphi 0, %s56
      %s60 = sphi 0, %s59
      %s76 = sphi 0, %s60
      %s86 = sphi 0, %s88
      %s89 = sphi 0, %s86
      %s90 = sphi 0, %s89
      %s106 = sphi 0, %s90
      %s114 = sphi 0, %s116
      %s117 = sphi 0, %s114
      %s118 = sphi 0, %s117
      %s134 = sphi 0, %s118
      %s142 = sphi 0, %s144
      %s145 = sphi 0, %s142
      %s146 = sphi 0, %s145
      %s162 = sphi 0, %s146
      %s170 = sphi 0, %s172
      %s173 = sphi 0, %s170
      %s174 = sphi 0, %s173
      %s190 = sphi 0, %s174
    $region4: #{tpu_custom_call.1} parent=1 // loop_header_branch
      %26 = sbr.rel (%p24) target = $region8
    $region5: #{tpu_custom_call.1} parent=1 // loop_body
      %s28 = ssub.s32 %s23, 1
      %s29 = ssub.s32 %s23, 2
      %s39 = sadd.s32 1, %s32
      %p40 = scmp.ge.s32.totalorder %s39, 1
      %s41 = scalar_select %p40, 0, %s39
      %s42 = sadd.s32 1, %s31
      %s43 = scalar_select %p40, %s42, %s31
      %p44 = scmp.ge.s32.totalorder %s43, 4
      %s45 = scalar_select %p44, 0, %s43
      %s46 = sadd.s32 1, %s30
      %s47 = scalar_select %p44, %s46, %s30
      %p48 = scmp.ge.s32.totalorder %s47, 1
      %s49 = scalar_select %p48, 0, %s47
      %s50 = sadd.s32 %s30, %s32
      %s51 = sadd.s32 %s49, %s41
      %s52 = ssub.s32 %s31, %s45
      %s53 = ssub.s32 %s50, %s51
      %s54 = sor.u32 %s52, %s53
      %p55 = scmp.eq.s32.totalorder %s54, 0
      %s57 = sadd.s32 %s56, 1
      %s58 = scalar_select %p55, %s56, %s57
      %p61 = pneg %p55
      %p62 = scmp.eq.s32.totalorder %s23, 3
      %p63 = por %p61, %p62
      %p64 = scmp.ne.s32.totalorder %s56, %s59
      %p65 = scmp.eq.s32.totalorder %s23, 0
      %p66 = por %p64, %p65
      %p67 = scmp.ne.s32.totalorder %s56, %s59
      %p68 = scmp.eq.s32.totalorder %s28, 3
      %p69 = por %p67, %p68
      %p70 = scmp.ne.s32.totalorder %s59, %s60
      %p71 = scmp.eq.s32.totalorder %s28, 0
      %p72 = por %p70, %p71
      %p73 = scmp.ne.s32.totalorder %s59, %s60
      %p74 = scmp.eq.s32.totalorder %s29, 3
      %p75 = por %p73, %p74
      %p77 = scmp.ne.s32.totalorder %s60, %s76
      %p78 = scmp.eq.s32.totalorder %s29, 0
      %p79 = por %p77, %p78
      %s80 = sadd.s32 %s30, %s32
      %s81 = sadd.s32 %s49, %s41
      %s82 = ssub.s32 %s31, %s45
      %s83 = ssub.s32 %s80, %s81
      %s84 = sor.u32 %s82, %s83
      %p85 = scmp.eq.s32.totalorder %s84, 0
      %s87 = sadd.s32 %s86, 1
      %s88 = scalar_select %p85, %s86, %s87
      %p91 = pneg %p85
      %p92 = scmp.eq.s32.totalorder %s23, 3
      %p93 = por %p91, %p92
      %p94 = scmp.ne.s32.totalorder %s86, %s89
      %p95 = scmp.eq.s32.totalorder %s23, 0
      %p96 = por %p94, %p95
      %p97 = scmp.ne.s32.totalorder %s86, %s89
      %p98 = scmp.eq.s32.totalorder %s28, 3
      %p99 = por %p97, %p98
      %p100 = scmp.ne.s32.totalorder %s89, %s90
      %p101 = scmp.eq.s32.totalorder %s28, 0
      %p102 = por %p100, %p101
      %p103 = scmp.ne.s32.totalorder %s89, %s90
      %p104 = scmp.eq.s32.totalorder %s29, 3
      %p105 = por %p103, %p104
      %p107 = scmp.ne.s32.totalorder %s90, %s106
      %p108 = scmp.eq.s32.totalorder %s29, 0
      %p109 = por %p107, %p108
      %s110 = ssub.s32 %s30, %s49
      %s111 = ssub.s32 %s31, %s45
      %s112 = sor.u32 %s110, %s111
      %p113 = scmp.eq.s32.totalorder %s112, 0
      %s115 = sadd.s32 %s114, 1
      %s116 = scalar_select %p113, %s114, %s115
      %p119 = pneg %p113
      %p120 = scmp.eq.s32.totalorder %s23, 3
      %p121 = por %p119, %p120
      %p122 = scmp.ne.s32.totalorder %s114, %s117
      %p123 = scmp.eq.s32.totalorder %s23, 0
      %p124 = por %p122, %p123
      %p125 = scmp.ne.s32.totalorder %s114, %s117
      %p126 = scmp.eq.s32.totalorder %s28, 3
      %p127 = por %p125, %p126
      %p128 = scmp.ne.s32.totalorder %s117, %s118
      %p129 = scmp.eq.s32.totalorder %s28, 0
      %p130 = por %p128, %p129
      %p131 = scmp.ne.s32.totalorder %s117, %s118
      %p132 = scmp.eq.s32.totalorder %s29, 3
      %p133 = por %p131, %p132
      %p135 = scmp.ne.s32.totalorder %s118, %s134
      %p136 = scmp.eq.s32.totalorder %s29, 0
      %p137 = por %p135, %p136
      %s138 = ssub.s32 %s30, %s49
      %s139 = ssub.s32 %s31, %s45
      %s140 = sor.u32 %s138, %s139
      %p141 = scmp.eq.s32.totalorder %s140, 0
      %s143 = sadd.s32 %s142, 1
      %s144 = scalar_select %p141, %s142, %s143
      %p147 = pneg %p141
      %p148 = scmp.eq.s32.totalorder %s23, 3
      %p149 = por %p147, %p148
      %p150 = scmp.ne.s32.totalorder %s142, %s145
      %p151 = scmp.eq.s32.totalorder %s23, 0
      %p152 = por %p150, %p151
      %p153 = scmp.ne.s32.totalorder %s142, %s145
      %p154 = scmp.eq.s32.totalorder %s28, 3
      %p155 = por %p153, %p154
      %p156 = scmp.ne.s32.totalorder %s145, %s146
      %p157 = scmp.eq.s32.totalorder %s28, 0
      %p158 = por %p156, %p157
      %p159 = scmp.ne.s32.totalorder %s145, %s146
      %p160 = scmp.eq.s32.totalorder %s29, 3
      %p161 = por %p159, %p160
      %p163 = scmp.ne.s32.totalorder %s146, %s162
      %p164 = scmp.eq.s32.totalorder %s29, 0
      %p165 = por %p163, %p164
      %s166 = ssub.s32 %s30, %s49
      %s167 = ssub.s32 %s31, %s45
      %s168 = sor.u32 %s166, %s167
      %p169 = scmp.eq.s32.totalorder %s168, 0
      %s171 = sadd.s32 %s170, 1
      %s172 = scalar_select %p169, %s170, %s171
      %p175 = pneg %p169
      %p176 = scmp.eq.s32.totalorder %s23, 3
      %p177 = por %p175, %p176
      %p178 = scmp.ne.s32.totalorder %s170, %s173
      %p179 = scmp.eq.s32.totalorder %s23, 0
      %p180 = por %p178, %p179
      %p181 = scmp.ne.s32.totalorder %s170, %s173
      %p182 = scmp.eq.s32.totalorder %s28, 3
      %p183 = por %p181, %p182
      %p184 = scmp.ne.s32.totalorder %s173, %s174
      %p185 = scmp.eq.s32.totalorder %s28, 0
      %p186 = por %p184, %p185
      %p187 = scmp.ne.s32.totalorder %s173, %s174
      %p188 = scmp.eq.s32.totalorder %s29, 3
      %p189 = por %p187, %p188
      %p191 = scmp.ne.s32.totalorder %s174, %s190
      %p192 = scmp.eq.s32.totalorder %s29, 0
      %p193 = por %p191, %p192
      %p194 = scmp.le.s32.totalorder 1, %s23
      %p195 = scmp.lt.s32.totalorder %s23, 5
      %p196 = pnand %p194, %p195
      %p197 = pneg %p196
      // Predicated region
      $region9: #{tpu_custom_call.1} parent=5 // pred_check
        _
      $region10: #{tpu_custom_call.1} parent=5 // pred_check_branch
        %199 = sbr.rel (%p196) target = $region12
      $region11: #{tpu_custom_call.1} parent=5 // pred_region
        %s200 = ssub.s32 %s23, 1
      $region12: #{tpu_custom_call.1} parent=5 // pred_fallthru
        _
      %p201 = scmp.lt.s32.totalorder %s23, 4
      // Predicated region
      $region13: #{tpu_custom_call.1} parent=5 // pred_check
        %p202 = pneg %p201
      $region14: #{tpu_custom_call.1} parent=5 // pred_check_branch
        %204 = sbr.rel (%p202) target = $region16
      $region15: #{tpu_custom_call.1} parent=5 // pred_region
        // Predicated region
        $region17: #{tpu_custom_call.1} parent=15 // pred_check
          %p205 = pneg %p66
        $region18: #{tpu_custom_call.1} parent=15 // pred_check_branch
          %207 = sbr.rel (%p205) target = $region20
        $region19: #{tpu_custom_call.1} parent=15 // pred_region
          %s208 = sand.u32 %s56, 1
          %s209 = scalar_lea.sflag [#allocation3], %s208
          %s210 = sand.u32 %s56, 1
          %s211 = smul.addr %s210, 16
          %s212 = scalar_lea.vmem [#allocation2], %s211
          %s213 = sadd.s32 %s30, %s32
          %s215 = ssub.s32 256, 256
          %216 = vsyncadd %s209, %s215
          %s217 = sadd.s32 %s213, %s31
          %s218 = smul.addr %s217, 128
          %s219 = scalar_lea.hbm %s0, %s218
          %s220 = sshll.u32 %s212, 4
          %s221 = int_to_ptr.vmem [resolvable:$true] %s220
          %226 = dma.hbm_to_vmem [thread:$0]  %s219, 256, %s221, %s209, 512, 128, 8
        $region20: #{tpu_custom_call.1} parent=15 // pred_fallthru
          _
        // Predicated region
        $region21: #{tpu_custom_call.1} parent=15 // pred_check
          %p227 = pneg %p96
        $region22: #{tpu_custom_call.1} parent=15 // pred_check_branch
          %229 = sbr.rel (%p227) target = $region24
        $region23: #{tpu_custom_call.1} parent=15 // pred_region
          %s230 = sand.u32 %s86, 1
          %s231 = scalar_lea.sflag [#allocation6], %s230
          %s232 = sand.u32 %s86, 1
          %s233 = smul.addr %s232, 16
          %s234 = scalar_lea.vmem [#allocation5], %s233
          %s235 = sadd.s32 %s30, %s32
          %s237 = ssub.s32 256, 256
          %238 = vsyncadd %s231, %s237
          %s239 = sadd.s32 %s235, %s31
          %s240 = smul.addr %s239, 128
          %s241 = scalar_lea.hbm %s1, %s240
          %s242 = sshll.u32 %s234, 4
          %s243 = int_to_ptr.vmem [resolvable:$true] %s242
          %248 = dma.hbm_to_vmem [thread:$0]  %s241, 256, %s243, %s231, 512, 128, 8
        $region24: #{tpu_custom_call.1} parent=15 // pred_fallthru
          _
      $region16: #{tpu_custom_call.1} parent=5 // pred_fallthru
        _
      %p249 = scmp.le.s32.totalorder 1, %s23
      %p250 = scmp.lt.s32.totalorder %s23, 5
      %p251 = pnand %p249, %p250
      %p252 = pneg %p251
      // Predicated region
      $region25: #{tpu_custom_call.1} parent=5 // pred_check
        _
      $region26: #{tpu_custom_call.1} parent=5 // pred_check_branch
        %254 = sbr.rel (%p251) target = $region28
      $region27: #{tpu_custom_call.1} parent=5 // pred_region
        %s255 = ssub.s32 %s23, 1
        %s256 = sand.u32 %s59, 1
        %s257 = scalar_lea.sflag [#allocation3], %s256
        %s258 = sand.u32 %s59, 1
        %s259 = smul.addr %s258, 16
        %s260 = scalar_lea.vmem [#allocation2], %s259
        // Predicated region
        $region29: #{tpu_custom_call.1} parent=27 // pred_check
          %p261 = pneg %p72
        $region30: #{tpu_custom_call.1} parent=27 // pred_check_branch
          %263 = sbr.rel (%p261) target = $region32
        $region31: #{tpu_custom_call.1} parent=27 // pred_region
          %264 = dma.done %s257, 256
        $region32: #{tpu_custom_call.1} parent=27 // pred_fallthru
          _
        %s265 = sand.u32 %s89, 1
        %s266 = scalar_lea.sflag [#allocation6], %s265
        %s267 = sand.u32 %s89, 1
        %s268 = smul.addr %s267, 16
        %s269 = scalar_lea.vmem [#allocation5], %s268
        // Predicated region
        $region33: #{tpu_custom_call.1} parent=27 // pred_check
          %p270 = pneg %p102
        $region34: #{tpu_custom_call.1} parent=27 // pred_check_branch
          %272 = sbr.rel (%p270) target = $region36
        $region35: #{tpu_custom_call.1} parent=27 // pred_region
          %273 = dma.done %s266, 256
        $region36: #{tpu_custom_call.1} parent=27 // pred_fallthru
          _
        %s274 = sand.u32 %s59, 1
        %s275 = scalar_lea.sflag [#allocation3], %s274
        %s276 = sand.u32 %s59, 1
        %s277 = smul.addr %s276, 16
        %s278 = scalar_lea.vmem [#allocation2], %s277
        %p279 = pneg %p72
        %p280 = pneg %p69
        %s281 = sand.u32 %s89, 1
        %s282 = scalar_lea.sflag [#allocation6], %s281
        %s283 = sand.u32 %s89, 1
        %s284 = smul.addr %s283, 16
        %s285 = scalar_lea.vmem [#allocation5], %s284
        %p286 = pneg %p102
        %p287 = pneg %p99
        %p288 = pneg %p130
        %p289 = pneg %p127
        %s290 = sand.u32 %s117, 1
        %s291 = scalar_lea.sflag [#allocation4], %s290
        %s292 = sand.u32 %s117, 1
        %s293 = smul.addr %s292, 8
        %s294 = scalar_lea.vmem [#allocation7], %s293
        %p295 = pneg %p158
        %p296 = pneg %p155
        %s297 = sand.u32 %s28, 1
        %s298 = scalar_lea.sflag [#allocation9], %s297
        %s299 = sand.u32 %s145, 1
        %s300 = smul.addr %s299, 8
        %s301 = scalar_lea.vmem [#allocation8], %s300
        %p302 = pneg %p186
        %p303 = pneg %p183
        %s304 = sand.u32 %s28, 1
        %s305 = scalar_lea.sflag [#allocation9], %s304
        %s306 = sand.u32 %s173, 1
        %s307 = smul.addr %s306, 8
        %s308 = scalar_lea.vmem [#allocation10], %s307
        %s309 = sadd.s32 %s33, %s35
        %s310 = sadd.s32 %s33, %s35
        %p311 = scmp.eq.s32.totalorder %s35, 0
        // Predicated region
        $region37: #{tpu_custom_call.1} parent=27 // pred_check
          %p312 = pneg %p311
        $region38: #{tpu_custom_call.1} parent=27 // pred_check_branch
          %314 = sbr.rel (%p312) target = $region40
        $region39: #{tpu_custom_call.1} parent=27 // pred_region
          %315 = vst [vmem:[%s294] sm:$0xff] 0.0
          %316 = vst [vmem:[%s301] sm:$0xff] 0.0
          %317 = vst [vmem:[%s308] sm:$0xff] 0.0
        $region40: #{tpu_custom_call.1} parent=27 // pred_fallthru
          _
        %v318 = vld [vmem:[%s260] sm:$0xff]
        %v319 = vld [vmem:[%s260 + $0x8] sm:$0xff]
        %v320 = vld [vmem:[%s269] sm:$0xff]
        %v321 = vld [vmem:[%s269 + $0x8] sm:$0xff]
        %v322 = vld [vmem:[%s294] sm:$0xff]
        %v323 = vmul.f32 %v318, %v320
        %v324 = vmul.f32 %v319, %v321
        %v325 = vadd.f32 %v323, %v324
        %v326 = vadd.f32 %v322, %v325
        %327 = vst [vmem:[%s294] sm:$0xff] %v326
        %v328 = vld [vmem:[%s301] sm:$0xff]
        %v329 = vmul.f32 %v318, %v318
        %v330 = vmul.f32 %v319, %v319
        %v331 = vadd.f32 %v329, %v330
        %v332 = vadd.f32 %v328, %v331
        %333 = vst [vmem:[%s301] sm:$0xff] %v332
        %v334 = vld [vmem:[%s308] sm:$0xff]
        %v335 = vmul.f32 %v320, %v320
        %v336 = vmul.f32 %v321, %v321
        %v337 = vadd.f32 %v335, %v336
        %v338 = vadd.f32 %v334, %v337
        %339 = vst [vmem:[%s308] sm:$0xff] %v338
        %s340 = sand.u32 %s117, 1
        %s341 = scalar_lea.sflag [#allocation4], %s340
        %s342 = sand.u32 %s117, 1
        %s343 = smul.addr %s342, 8
        %s344 = scalar_lea.vmem [#allocation7], %s343
        %s345 = sand.u32 %s28, 1
        %s346 = scalar_lea.sflag [#allocation9], %s345
        %s347 = sand.u32 %s145, 1
        %s348 = smul.addr %s347, 8
        %s349 = scalar_lea.vmem [#allocation8], %s348
        %s350 = sand.u32 %s28, 1
        %s351 = scalar_lea.sflag [#allocation9], %s350
        %s352 = sand.u32 %s173, 1
        %s353 = smul.addr %s352, 8
        %s354 = scalar_lea.vmem [#allocation10], %s353
        // Predicated region
        $region41: #{tpu_custom_call.1} parent=27 // pred_check
          %p355 = pneg %p127
        $region42: #{tpu_custom_call.1} parent=27 // pred_check_branch
          %357 = sbr.rel (%p355) target = $region44
        $region43: #{tpu_custom_call.1} parent=27 // pred_region
          %s359 = ssub.s32 128, 128
          %360 = vsyncadd %s341, %s359
          %s361 = smul.addr %s33, 4
          %s362 = sadd.s32 %s34, %s361
          %s363 = smul.addr %s362, 128
          %s364 = scalar_lea.hbm %s2, %s363
          %s366 = sshll.u32 %s344, 4
          %s367 = int_to_ptr.vmem [resolvable:$true] %s366
          %369 = dma.vmem_to_hbm [thread:$0]  %s367, 128, %s364, %s341
        $region44: #{tpu_custom_call.1} parent=27 // pred_fallthru
          _
        // Predicated region
        $region45: #{tpu_custom_call.1} parent=27 // pred_check
          %p370 = pneg %p155
        $region46: #{tpu_custom_call.1} parent=27 // pred_check_branch
          %372 = sbr.rel (%p370) target = $region48
        $region47: #{tpu_custom_call.1} parent=27 // pred_region
          %s374 = ssub.s32 128, 128
          %375 = vsyncadd %s346, %s374
          %s376 = smul.addr %s33, 4
          %s377 = sadd.s32 %s34, %s376
          %s378 = smul.addr %s377, 128
          %s379 = scalar_lea.hbm %s3, %s378
          %s381 = sshll.u32 %s349, 4
          %s382 = int_to_ptr.vmem [resolvable:$true] %s381
          %384 = dma.vmem_to_hbm [thread:$0]  %s382, 128, %s379, %s346
        $region48: #{tpu_custom_call.1} parent=27 // pred_fallthru
          _
        // Predicated region
        $region49: #{tpu_custom_call.1} parent=27 // pred_check
          %p385 = pneg %p183
        $region50: #{tpu_custom_call.1} parent=27 // pred_check_branch
          %387 = sbr.rel (%p385) target = $region52
        $region51: #{tpu_custom_call.1} parent=27 // pred_region
          %s389 = ssub.s32 128, 128
          %390 = vsyncadd %s351, %s389
          %s391 = smul.addr %s33, 4
          %s392 = sadd.s32 %s34, %s391
          %s393 = smul.addr %s392, 128
          %s394 = scalar_lea.hbm %s4, %s393
          %s396 = sshll.u32 %s354, 4
          %s397 = int_to_ptr.vmem [resolvable:$true] %s396
          %399 = dma.vmem_to_hbm [thread:$0]  %s397, 128, %s394, %s351
        $region52: #{tpu_custom_call.1} parent=27 // pred_fallthru
          _
      $region28: #{tpu_custom_call.1} parent=5 // pred_fallthru
        _
      %p400 = scmp.le.s32.totalorder 2, %s23
      // Predicated region
      $region53: #{tpu_custom_call.1} parent=5 // pred_check
        %p401 = pneg %p400
      $region54: #{tpu_custom_call.1} parent=5 // pred_check_branch
        %403 = sbr.rel (%p401) target = $region56
      $region55: #{tpu_custom_call.1} parent=5 // pred_region
        %s404 = ssub.s32 %s23, 2
        // Predicated region
        $region57: #{tpu_custom_call.1} parent=55 // pred_check
          %p405 = pneg %p133
        $region58: #{tpu_custom_call.1} parent=55 // pred_check_branch
          %407 = sbr.rel (%p405) target = $region60
        $region59: #{tpu_custom_call.1} parent=55 // pred_region
          %s408 = sand.u32 %s118, 1
          %s409 = scalar_lea.sflag [#allocation4], %s408
          %s410 = sand.u32 %s118, 1
          %s411 = smul.addr %s410, 8
          %s412 = scalar_lea.vmem [#allocation7], %s411
          %413 = dma.done %s409, 128
        $region60: #{tpu_custom_call.1} parent=55 // pred_fallthru
          _
        // Predicated region
        $region61: #{tpu_custom_call.1} parent=55 // pred_check
          %p414 = pneg %p161
        $region62: #{tpu_custom_call.1} parent=55 // pred_check_branch
          %416 = sbr.rel (%p414) target = $region64
        $region63: #{tpu_custom_call.1} parent=55 // pred_region
          %s417 = sand.u32 %s29, 1
          %s418 = scalar_lea.sflag [#allocation9], %s417
          %s419 = sand.u32 %s146, 1
          %s420 = smul.addr %s419, 8
          %s421 = scalar_lea.vmem [#allocation8], %s420
          %422 = dma.done %s418, 128
        $region64: #{tpu_custom_call.1} parent=55 // pred_fallthru
          _
        // Predicated region
        $region65: #{tpu_custom_call.1} parent=55 // pred_check
          %p423 = pneg %p189
        $region66: #{tpu_custom_call.1} parent=55 // pred_check_branch
          %425 = sbr.rel (%p423) target = $region68
        $region67: #{tpu_custom_call.1} parent=55 // pred_region
          %s426 = sand.u32 %s29, 1
          %s427 = scalar_lea.sflag [#allocation9], %s426
          %s428 = sand.u32 %s174, 1
          %s429 = smul.addr %s428, 8
          %s430 = scalar_lea.vmem [#allocation10], %s429
          %431 = dma.done %s427, 128
        $region68: #{tpu_custom_call.1} parent=55 // pred_fallthru
          _
      $region56: #{tpu_custom_call.1} parent=5 // pred_fallthru
        _
    $region6: #{tpu_custom_call.1} parent=1 // loop_footer
      %s27 = sadd.s32 1, %s23
    $region7: #{tpu_custom_call.1} parent=1 // loop_footer_branch
      %22 = sbr.rel target = $region3
    $region8: #{tpu_custom_call.1} parent=1 // loop_exit
      _
    %432 = vsyncpa [#allocation3], 1
    %s433 = scalar_lea.sflag [#allocation3], 1
    %434 = vsyncpa %s433, 1
    %435 = vsyncpa [#allocation6], 1
    %s436 = scalar_lea.sflag [#allocation6], 1
    %437 = vsyncpa %s436, 1
    %438 = vsyncpa [#allocation4], 1
    %s439 = scalar_lea.sflag [#allocation4], 1
    %440 = vsyncpa %s439, 1
    %441 = vsyncpa [#allocation9], 1
    %s442 = scalar_lea.sflag [#allocation9], 1
    %443 = vsyncpa %s442, 1

</llo_original>
